<compile_context>
chip_gen: v6e
topology: v6e:2x2x1
jax: 0.10.0
libtpu: 0.0.40
codegen_flags: <defaults>
</compile_context>

<pallas_src>
from typing import Tuple

import jax
import jax.numpy as jnp
import numpy as np
from jax.experimental import pallas as pl
from jax.experimental.pallas import tpu as pltpu


def _bcast_copy_kernel(emb_ref, out_ref):
    # emb block: (TW, H*C); out block: (TB, TW, H*C).
    # Leading-dim broadcast = repeated unmasked vst from resident vregs.
    out_ref[...] = jnp.broadcast_to(emb_ref[...][None, :, :], out_ref.shape)


_IN_TILE_TARGET = 4 << 20    # target bytes for one input (TW, H*C) slab
_PLAN_BUDGET = 24 << 20      # budget for 2x in-tile + 2x out-tile live VMEM
_VMEM_LIMIT = 48 << 20       # explicit scoped-VMEM limit (headroom on v7x's 64 MiB)


def _plan_tiles(W: int, hc: int, dtype, batch: int) -> Tuple[int, int]:
    """Pick (TW, TB) so the double-buffered plan stays within _PLAN_BUDGET."""
    itemsize = jnp.dtype(dtype).itemsize
    # Minimum second-minor tile: 8 rows (f32), 16 (bf16/f16), 32 (int8/fp8).
    sub = max(8, 32 // max(itemsize, 1))
    row_bytes = hc * itemsize

    # --- W tile: largest tile under the input target.  Prefer a divisor of W
    # (no ragged edge); otherwise clamp to a multiple of `sub` and let
    # pl.cdiv pad the last block (Pallas clips the boundary writeback).
    max_tw = max(1, _IN_TILE_TARGET // max(row_bytes, 1))
    if W <= max_tw:
        tw = W
    else:
        best = 0
        t = sub
        while t <= max_tw:
            if W % t == 0:
                best = t
            t += sub
        tw = best if best > 0 else max(sub, (max_tw // sub) * sub)
    in_tile = tw * row_bytes

    # --- Batch tile: grow the (TB, TW, H*C) output tile until the plan
    # (2x in + 2x out, both double-buffered by the pipeline) hits the budget.
    per_b = tw * row_bytes
    avail = max(_PLAN_BUDGET - 2 * in_tile, 2 * per_b)
    tb = max(1, min(batch, avail // (2 * per_b)))
    return tw, tb


def broadcast_embedding(emb: jax.Array, batch: int) -> jax.Array:
    """Return emb broadcast over the batch dim: (B, W, H, C)."""
    W, H, C = emb.shape
    hc = H * C
    emb_flat = emb.reshape(W, hc)  # free contiguous reshape -> lane-dense rows

    tw, tb = _plan_tiles(W, hc, emb.dtype, batch)
    grid = (pl.cdiv(W, tw), pl.cdiv(batch, tb))

    out_flat = pl.pallas_call(
        _bcast_copy_kernel,
        out_shape=jax.ShapeDtypeStruct((batch, W, hc), emb.dtype),
        grid=grid,
        in_specs=[pl.BlockSpec((tw, hc), lambda w, b: (w, 0))],
        out_specs=pl.BlockSpec((tb, tw, hc), lambda w, b: (b, w, 0)),
        compiler_params=pltpu.CompilerParams(
            # Disjoint output blocks, no accumulator -> both axes parallel;
            # lets v7x shard across its 2 TensorCores even when num_w == 1.
            dimension_semantics=("parallel", "parallel"),
            vmem_limit_bytes=_VMEM_LIMIT,
        ),
    )(emb_flat)
    return out_flat.reshape(batch, W, H, C)


class LearnableEmbedding2D:
    """JAX/Pallas port of the PyTorch LearnableEmbedding2D module."""

    def __init__(self, size: Tuple[int, int, int], *, key=None):
        # nn.Parameter(torch.randn(size)) equivalent.
        if key is None:
            key = jax.random.PRNGKey(0)
        self.emb = jax.random.normal(key, size, dtype=jnp.float32)

    def __call__(self, x: jax.Array) -> jax.Array:
        assert x.ndim == 4, "Tensor must be 4d"
        # Forward only uses x.shape[0]; output shape/dtype follow self.emb,
        # exactly like emb.repeat(b, 1, 1, 1) in the PyTorch module.
        return broadcast_embedding(self.emb, x.shape[0])


def _reference(emb: jax.Array, batch: int) -> jax.Array:
    """Pure-JAX mirror of the PyTorch forward, for verification."""
    return jnp.broadcast_to(emb[None, ...], (batch,) + emb.shape)


if __name__ == "__main__":
    key = jax.random.PRNGKey(0)
    k_emb, k_x = jax.random.split(key)

    # (b, w, h, c) = (2, 16, 16, 32); module size = (w, h, c) = (16, 16, 32)
    B, W, H, C = 2, 16, 16, 32
    x = jax.random.normal(k_x, (B, W, H, C), dtype=jnp.float32)

    mod = LearnableEmbedding2D((W, H, C), key=k_emb)
    out = mod(x)
    out = jax.block_until_ready(out)

    expected = _reference(mod.emb, B)
    np.testing.assert_allclose(np.asarray(out), np.asarray(expected), rtol=0, atol=0)

    print("KERNEL_OK")
</pallas_src>

<mosaic_0001>
module attributes {stable_mosaic.version = 11 : i64} {
  func.func @_bcast_copy_kernel(%arg0: i32, %arg1: i32, %arg2: memref<16x512xf32, #tpu.memory_space<vmem>>, %arg3: memref<2x16x512xf32, #tpu.memory_space<vmem>>) attributes {dimension_semantics = [#tpu.dimension_semantics<parallel>, #tpu.dimension_semantics<parallel>], iteration_bounds = array<i64: 1, 1>, scalar_prefetch = 0 : i64, scratch_operands = 0 : i64, tpu.core_type = #tpu.core_type<tc>, window_params = [{transform_indices = @transform_0, window_bounds = array<i64: 16, 512>}, {transform_indices = @transform_1, window_bounds = array<i64: 2, 16, 512>}]} {
    %c0 = arith.constant 0 : index
    %c0_0 = arith.constant 0 : index
    %0 = vector.load %arg2[%c0, %c0_0] : memref<16x512xf32, #tpu.memory_space<vmem>>, vector<16x512xf32>
    %1 = vector.shape_cast %0 : vector<16x512xf32> to vector<1x16x512xf32>
    %2 = vector.shape_cast %1 : vector<1x16x512xf32> to vector<1x16x512xf32>
    %3 = vector.broadcast %2 : vector<1x16x512xf32> to vector<2x16x512xf32>
    %c0_1 = arith.constant 0 : index
    %c0_2 = arith.constant 0 : index
    %c0_3 = arith.constant 0 : index
    %4 = vector.load %arg3[%c0_1, %c0_2, %c0_3] : memref<2x16x512xf32, #tpu.memory_space<vmem>>, vector<2x16x512xf32>
    tpu.vector_store %arg3[%c0_1, %c0_2, %c0_3], %3 {strides = array<i32>} : memref<2x16x512xf32, #tpu.memory_space<vmem>>, vector<2x16x512xf32>,
    return
  }
  func.func @transform_0(%arg0: i32, %arg1: i32) -> (i32, i32) {
    %c0_i32 = arith.constant 0 : i32
    %c0_i32_0 = arith.constant 0 : i32
    return %arg0, %c0_i32 : i32, i32
  }
  func.func @transform_1(%arg0: i32, %arg1: i32) -> (i32, i32, i32) {
    %c0_i32 = arith.constant 0 : i32
    %c0_i32_0 = arith.constant 0 : i32
    return %arg1, %arg0, %c0_i32 : i32, i32, i32
  }
}

</mosaic_0001>

<llo_original>
// kernel: tpu_custom_call.1
$region0: #{tpu_custom_call.1}
  #allocation0 [shape = 'u32[]', space=smem, size = 0x4, offset = 0x4, fixed_abs, tag = 'smem constant byte address 0x4 - core index']
  #allocation1 [shape = 'u32[144,128]{1,0:T(1,128)}', space=vmem, size = 0x12000, scoped, tag = 'internal scratch']
  %s0 = inlined_call_operand.hbm [shape: f32[16,512], index: 0, kind: input, shape index: {}]
  %s1 = inlined_call_operand.hbm [shape: f32[2,16,512], index: 1, kind: output, shape index: {}]
  %s2 = sld [smem:[#allocation0]]
  $region18: #{tpu_custom_call.1} parent=0
    _
  %s4 = ssub.s32 1, %s2
  %s5 = scalar_select 0, %s4, %s2
  $region1: #{tpu_custom_call.1} parent=0
    #allocation2 [shape = 'u8[32768]{0}', space=vmem, size = 0x8000, scoped, tag = 'input window, operand 0, single buffered']
    #allocation3 [shape = 's32[1]{0}', space=sflag, size = 0x4, scoped, tag = 'scoped memory for tpu_custom_call.1']
    #allocation4 [shape = 's32[1]{0}', space=sflag, size = 0x4, scoped, tag = 'scoped memory for tpu_custom_call.1']
    #allocation5 [shape = 'u8[65536]{0}', space=vmem, size = 0x10000, scoped, tag = 'output window, operand 0, single buffered']
    %6 = vsyncpa [#allocation3], 0
    %7 = vsyncpa [#allocation4], 0
    // Predicated region
    $region2: #{tpu_custom_call.1} parent=1 // pred_check
      _
    $region3: #{tpu_custom_call.1} parent=1 // pred_check_branch
      %9 = sbr.rel (0) target = $region5
    $region4: #{tpu_custom_call.1} parent=1 // pred_region
      %s11 = ssub.s32 1024, 1024
      %12 = vsyncadd [#allocation3], %s11
      %s13 = sshll.u32 [#allocation2], 4
      %s14 = int_to_ptr.vmem [resolvable:$true] %s13
      %19 = dma.hbm_to_vmem [thread:$0]  %s0, 1024, %s14, [#allocation3], 512, 512, 32
    $region5: #{tpu_custom_call.1} parent=1 // pred_fallthru
      _
    // Predicated region
    $region6: #{tpu_custom_call.1} parent=1 // pred_check
      _
    $region7: #{tpu_custom_call.1} parent=1 // pred_check_branch
      %21 = sbr.rel (0) target = $region9
    $region8: #{tpu_custom_call.1} parent=1 // pred_region
      %22 = dma.done [#allocation3], 1024
    $region9: #{tpu_custom_call.1} parent=1 // pred_fallthru
      _
    %v23 = vld [vmem:[#allocation2] sm:$0xff]
    %v24 = vld [vmem:[#allocation2 + $0x8] sm:$0xff]
    %v25 = vld [vmem:[#allocation2 + $0x10] sm:$0xff]
    %v26 = vld [vmem:[#allocation2 + $0x18] sm:$0xff]
    %v27 = vld [vmem:[#allocation2 + $0x20] sm:$0xff]
    %v28 = vld [vmem:[#allocation2 + $0x28] sm:$0xff]
    %v29 = vld [vmem:[#allocation2 + $0x30] sm:$0xff]
    %v30 = vld [vmem:[#allocation2 + $0x38] sm:$0xff]
    %31 = vst [vmem:[#allocation5] sm:$0xff] %v23
    %32 = vst [vmem:[#allocation5 + $0x8] sm:$0xff] %v24
    %33 = vst [vmem:[#allocation5 + $0x10] sm:$0xff] %v25
    %34 = vst [vmem:[#allocation5 + $0x18] sm:$0xff] %v26
    %35 = vst [vmem:[#allocation5 + $0x20] sm:$0xff] %v27
    %36 = vst [vmem:[#allocation5 + $0x28] sm:$0xff] %v28
    %37 = vst [vmem:[#allocation5 + $0x30] sm:$0xff] %v29
    %38 = vst [vmem:[#allocation5 + $0x38] sm:$0xff] %v30
    %39 = vst [vmem:[#allocation5 + $0x40] sm:$0xff] %v23
    %40 = vst [vmem:[#allocation5 + $0x48] sm:$0xff] %v24
    %41 = vst [vmem:[#allocation5 + $0x50] sm:$0xff] %v25
    %42 = vst [vmem:[#allocation5 + $0x58] sm:$0xff] %v26
    %43 = vst [vmem:[#allocation5 + $0x60] sm:$0xff] %v27
    %44 = vst [vmem:[#allocation5 + $0x68] sm:$0xff] %v28
    %45 = vst [vmem:[#allocation5 + $0x70] sm:$0xff] %v29
    %46 = vst [vmem:[#allocation5 + $0x78] sm:$0xff] %v30
    // Predicated region
    $region10: #{tpu_custom_call.1} parent=1 // pred_check
      _
    $region11: #{tpu_custom_call.1} parent=1 // pred_check_branch
      %48 = sbr.rel (0) target = $region13
    $region12: #{tpu_custom_call.1} parent=1 // pred_region
      %s50 = ssub.s32 2048, 2048
      %51 = vsyncadd [#allocation4], %s50
      %s52 = sshll.u32 [#allocation5], 4
      %s53 = int_to_ptr.vmem [resolvable:$true] %s52
      %58 = dma.vmem_to_hbm [thread:$0]  %s53, 2048, %s1, [#allocation4], 512, 512, 32
    $region13: #{tpu_custom_call.1} parent=1 // pred_fallthru
      _
    // Predicated region
    $region14: #{tpu_custom_call.1} parent=1 // pred_check
      _
    $region15: #{tpu_custom_call.1} parent=1 // pred_check_branch
      %60 = sbr.rel (0) target = $region17
    $region16: #{tpu_custom_call.1} parent=1 // pred_region
      %61 = dma.done [#allocation4], 2048
    $region17: #{tpu_custom_call.1} parent=1 // pred_fallthru
      _
    %62 = vsyncpa [#allocation3], 1
    %63 = vsyncpa [#allocation4], 1

</llo_original>
